<compile_context>
chip_gen: v6e
topology: v6e:2x2x1
jax: 0.10.0
libtpu: 0.0.40
codegen_flags: <defaults>
</compile_context>

<pallas_src>
import numpy as np
import jax
import jax.numpy as jnp
from jax.experimental import pallas as pl
from jax.experimental.pallas import tpu as pltpu

# -------------------- configuration (small, consistent with the module) -----
FEATURE_VECTOR_SIZE = 8          # conf 'feature_vector_size'
LATENT_SIZE = 4                  # conf 'latent_vector_size'
IMP_D_IN, IMP_D_OUT = 3, 1
IMP_DIMS = [32, 32, 32]          # hidden dims of ImplicitNetwork
IMP_SKIP_IN = (2,)               # skip connection into layer 2
REN_D_IN, REN_D_OUT = 9, 3       # points(3) + view(3) + normals(3) -> rgb(3)
REN_DIMS = [32, 32]              # hidden dims of RenderingNetwork

IMP_FULL_DIMS = [IMP_D_IN] + IMP_DIMS + [IMP_D_OUT + FEATURE_VECTOR_SIZE]   # [3,32,32,32,9]
REN_FULL_DIMS = [REN_D_IN + FEATURE_VECTOR_SIZE + LATENT_SIZE] + REN_DIMS + [REN_D_OUT]  # [21,32,32,3]

H = 32  # hidden width (all packed 32-column weights)


def _round_up(x, m):
    return ((x + m - 1) // m) * m


# -------------------- Pallas kernel ------------------------------------------
def _softplus100(x):
    # nn.Softplus(beta=100, threshold=20): x if 100*x > 20 else log1p(exp(100*x))/100
    bx = 100.0 * x
    safe = jnp.log1p(jnp.exp(jnp.minimum(bx, 20.0))) * 0.01
    return jnp.where(bx > 20.0, x, safe)


def fused_mlp_kernel(x_ref, wx_ref, w32_ref, wrf_ref, b_ref, out_ref):
    """Fused ImplicitNetwork + RenderingNetwork in (D, N) layout.

    x_ref : (3, T) points (lane-tiled).
    wx_ref: (96, 3)  packed x-projection weights  [w0 ; w2x/sqrt2 ; wr0p]
    w32_ref:(120,32) packed 32-col weights
              rows   0: 32  w1  (padded 29->32 rows)
              rows  32: 64  w2h/sqrt2 (padded 29->32 cols)
              rows  64: 73  w3  (row 64 = sdf, rows 65:73 = features)
              rows  80:112  wr1
              rows 112:115  wr2
    wrf_ref:(32, 8)  wr0f (rendering layer-0 feature weights)
    b_ref : (184, 1) packed biases (same block order, see prepare_fused_params)
    out_ref:(4, T)   row 0 = sdf, rows 1:3 = rgb
    """
    x = x_ref[...]                                                    # (3, T)
    w32 = w32_ref[...]
    b = b_ref[...]
    dot = lambda a, c: jnp.dot(a, c, preferred_element_type=jnp.float32)

    # All x-projections in one matmul: [w0@x ; (w2x/sqrt2)@x ; wr0p@x]
    px = dot(wx_ref[...], x)                                          # (96, T)

    h = _softplus100(px[0:32] + b[0:32])                              # implicit layer 0
    h = _softplus100(dot(w32[0:32], h) + b[32:64])                    # implicit layer 1 (padded)
    h = _softplus100(dot(w32[32:64], h) + px[32:64] + b[64:96])       # implicit layer 2 (skip)

    y3 = dot(w32[64:73], h) + b[96:105]                               # (9, T): sdf | features
    sdf = y3[0:1]
    feat = y3[1:9]

    r = jnp.maximum(dot(wrf_ref[...], feat) + px[64:96] + b[112:144], 0.0)   # render layer 0
    r = jnp.maximum(dot(w32[80:112], r) + b[144:176], 0.0)                   # render layer 1
    rgb = jnp.tanh(dot(w32[112:115], r) + b[176:179])                        # render layer 2

    out_ref[...] = jnp.concatenate([sdf, rgb], axis=0)                # (4, T)


def _grid_for(n):
    """Lane tile (multiple of 128) and grid steps.

    - n <= 256: one step, pad to one tile only (no wasted second step).
    - n  > 256: >= 2 steps, each carrying real points (v7x 2-TC split);
                tile capped at 1024 (f32 intermediates spill gently beyond).
    """
    n128 = _round_up(max(n, 1), 128)
    if n128 <= 256:
        return n128, 1
    tile = min(1024, _round_up(pl.cdiv(n128, 2), 128))
    steps = pl.cdiv(n128, tile)
    return tile, steps


def idr_mlp_fused(points_t, fused_params):
    """points_t: (3, N) f32 -> (sdf (N,1), rgb (N,3)) via a single Pallas pass."""
    n = points_t.shape[1]
    tile, steps = _grid_for(n)
    n_pad = tile * steps
    if n_pad != n:
        points_t = jnp.pad(points_t, ((0, 0), (0, n_pad - n)))        # cheap lane pad (3 rows)

    wx, w32, wrf, b = fused_params
    in_specs = [
        pl.BlockSpec((IMP_D_IN, tile), lambda i: (0, i)),
        pl.BlockSpec(wx.shape, lambda i: (0, 0)),                      # resident, fetched once
        pl.BlockSpec(w32.shape, lambda i: (0, 0)),
        pl.BlockSpec(wrf.shape, lambda i: (0, 0)),
        pl.BlockSpec(b.shape, lambda i: (0, 0)),
    ]

    out_t = pl.pallas_call(
        fused_mlp_kernel,
        out_shape=jax.ShapeDtypeStruct((4, n_pad), jnp.float32),
        grid=(steps,),
        in_specs=in_specs,
        out_specs=pl.BlockSpec((4, tile), lambda i: (0, i)),
        compiler_params=pltpu.CompilerParams(dimension_semantics=("parallel",)),
    )(points_t, wx, w32, wrf, b)

    return out_t[0:1, :n].T, out_t[1:4, :n].T                          # (N,1), (N,3)


# -------------------- parameter preparation (outside the kernel) -------------
def prepare_fused_params(imp_params, ren_params, latent_code):
    """Pack / pre-scale / fold constants into the kernel's 4 packed arrays.

    NOTE (guarded assumption): the rendering-layer-0 folding (dropping the
    view/normal columns and folding the constant latent into the bias) is only
    valid because this eval path hard-zeros v_dirs/normals and the latent code
    is constant per call.  If real view dirs / SDF-gradient normals are ever
    fed, this folding must be removed.
    """
    (w0, b0), (w1, b1), (w2, b2), (w3, b3) = imp_params
    inv_sqrt2 = jnp.float32(1.0 / np.sqrt(2.0))
    k = w2.shape[1] - IMP_D_IN                      # 29: columns fed by h, rest by x_in
    w2h = w2[:, :k] * inv_sqrt2                     # (32, 29)
    w2x = w2[:, k:] * inv_sqrt2                     # (32, 3)

    (r0w, r0b), (r1w, r1b), (r2w, r2b) = ren_params
    # rendering layer-0 input columns: [0:3] points, [3:9] view+normals (hard zeros),
    # [9:17] feature vector, [17:21] latent code (constant per call)
    wr0p = r0w[:, 0:IMP_D_IN]                                         # (32, 3)
    wr0f = r0w[:, REN_D_IN:REN_D_IN + FEATURE_VECTOR_SIZE]            # (32, 8)
    wr0l = r0w[:, REN_D_IN + FEATURE_VECTOR_SIZE:]                    # (32, 4)
    br0 = r0b + wr0l @ latent_code.reshape(-1)                        # (32,)

    # ---- packed x-projection weights (96, 3): one matmul feeds 3 layers
    wx = jnp.concatenate([w0, w2x, wr0p], axis=0)

    # ---- packed 32-column weights (120, 32), 8-sublane-aligned blocks
    w1p = jnp.zeros((H, H), jnp.float32).at[:k, :].set(w1)            # pad 29 -> 32 rows
    w2hp = jnp.zeros((H, H), jnp.float32).at[:, :k].set(w2h)          # pad 29 -> 32 cols
    w3p = jnp.zeros((16, H), jnp.float32).at[:w3.shape[0], :].set(w3) # sdf row + 8 feat rows
    wr2p = jnp.zeros((8, H), jnp.float32).at[:REN_D_OUT, :].set(r2w)
    w32 = jnp.concatenate([w1p, w2hp, w3p, r1w, wr2p], axis=0)        # (120, 32)

    # ---- packed biases (184, 1), matching block order / offsets used in-kernel
    def pad_to(v, rows):
        return jnp.zeros((rows,), jnp.float32).at[:v.shape[0]].set(v)

    b = jnp.concatenate([
        b0,                 #   0: 32  implicit layer 0
        pad_to(b1, H),      #  32: 64  implicit layer 1 (padded)
        b2,                 #  64: 96  implicit layer 2
        pad_to(b3, 16),     #  96:112  sdf + features
        br0,                # 112:144  render layer 0 (latent folded in)
        r1b,                # 144:176  render layer 1
        pad_to(r2b, 8),     # 176:184  render layer 2
    ])[:, None]                                                       # (184, 1)

    return wx, w32, wr0f, b


# -------------------- deterministic parameter init (PyTorch (out,in) layout) -
def init_implicit_params(key):
    """Geometric init (weight_norm at init is identity)."""
    shapes = []
    n_layers = len(IMP_FULL_DIMS)
    for l in range(n_layers - 1):
        out_dim = IMP_FULL_DIMS[l + 1] - (IMP_FULL_DIMS[0] if (l + 1) in IMP_SKIP_IN else 0)
        shapes.append((out_dim, IMP_FULL_DIMS[l]))
    params, keys = [], jax.random.split(key, len(shapes))
    for l, (dout, din) in enumerate(shapes):
        if l == len(shapes) - 1:   # last layer: N(sqrt(pi)/sqrt(din), 1e-4), bias -1
            w = (np.sqrt(np.pi) / np.sqrt(din)
                 + 1e-4 * jax.random.normal(keys[l], (dout, din), jnp.float32))
            b = jnp.full((dout,), -1.0, jnp.float32)
        else:                      # N(0, sqrt(2)/sqrt(out_dim)), bias 0
            w = (np.sqrt(2.0) / np.sqrt(dout)
                 * jax.random.normal(keys[l], (dout, din), jnp.float32))
            b = jnp.zeros((dout,), jnp.float32)
        params.append((w, b))
    return params


def init_rendering_params(key):
    """PyTorch-default-style uniform init (deterministic)."""
    params, keys = [], jax.random.split(key, len(REN_FULL_DIMS) - 1)
    for l in range(len(REN_FULL_DIMS) - 1):
        din, dout = REN_FULL_DIMS[l], REN_FULL_DIMS[l + 1]
        bound = 1.0 / np.sqrt(din)
        kw, kb = jax.random.split(keys[l])
        w = jax.random.uniform(kw, (dout, din), jnp.float32, -bound, bound)
        b = jax.random.uniform(kb, (dout,), jnp.float32, -bound, bound)
        params.append((w, b))
    return params


# -------------------- plain-JAX glue (camera rays, masking, assembly) -------
def get_camera_rays_t(uv, pose, intrinsics):
    """rend_util.get_camera_params, computed in pixel-minor (B,3,P) layout."""
    cam_loc = pose[:, :3, 3]                                          # (B, 3)
    fx, fy = intrinsics[:, 0, 0], intrinsics[:, 1, 1]
    cx, cy = intrinsics[:, 0, 2], intrinsics[:, 1, 2]
    x_lift = (uv[..., 0] - cx[:, None]) / fx[:, None]                 # (B, P)
    y_lift = (uv[..., 1] - cy[:, None]) / fy[:, None]
    ones = jnp.ones_like(x_lift)
    p_cam = jnp.stack([x_lift, y_lift, ones, ones], axis=1)           # (B, 4, P)
    world = jnp.einsum('bij,bjp->bip', pose, p_cam)[:, :3, :]         # (B, 3, P)
    ray = world - cam_loc[:, :, None]
    ray = ray / jnp.linalg.norm(ray, axis=1, keepdims=True)
    return ray, cam_loc                                               # (B,3,P), (B,3)


def idr_forward(inputs, imp_params, ren_params):
    intrinsics = inputs['intrinsics']
    uv = inputs['uv']
    pose = inputs['pose']
    object_mask = inputs['object_mask'].reshape(-1)
    latent_code = inputs['obj']

    ray_t, cam_loc = get_camera_rays_t(uv, pose, intrinsics)          # (B,3,P)
    B, _, P = ray_t.shape

    # TODO(synk): HyperNetwork / SingleBVPNet deform net not provided; deform=False so hypo_params unused.
    # TODO(synk): RayTracing sphere tracer not provided; stand-in marches a fixed distance of 2.0.
    dists = jnp.full((B, 1, P), 2.0, jnp.float32)

    # Points built directly in pixel-minor layout -> (3, N), no layout transpose on kernel path.
    pts_b3p = cam_loc[:, :, None] + dists * ray_t                     # (B, 3, P)
    points_t = jnp.swapaxes(pts_b3p, 0, 1).reshape(3, B * P)          # (3, N)
    points = points_t.T                                               # (N, 3) for outputs

    # Single fused Pallas pass: sdf + rgb for all points (implicit MLP runs exactly once).
    fused = prepare_fused_params(imp_params, ren_params, latent_code)
    sdf_output, rgb_all = idr_mlp_fused(points_t, fused)
    network_object_mask = sdf_output[:, 0] < 0.0

    # deform=False -> zero deformation / correction (as in the reference)
    deformation = jnp.zeros((points.shape[0], 3), jnp.float32)
    correction = jnp.zeros((points.shape[0], 1), jnp.float32)

    # TODO(synk): autograd SDF gradient of ImplicitNetwork not reproduced; the reference
    # zeroes normals/v_dirs before the rendering net anyway, so the zero/latent folding
    # in prepare_fused_params yields identical rgb values in this eval path.
    surface_mask = network_object_mask                                # eval-mode branch
    rgb_values = jnp.where(surface_mask[:, None], rgb_all, jnp.ones_like(points))

    return {
        'points': points,
        'rgb_values': rgb_values,
        'sdf_output': sdf_output,
        'network_object_mask': network_object_mask,
        'object_mask': object_mask,
        'grad_theta': None,        # eval mode
        'deformation': deformation,
        'correction': correction,
    }


# -------------------- main ---------------------------------------------------
if __name__ == "__main__":
    key = jax.random.PRNGKey(0)
    k_imp, k_ren, k_uv, k_mask, k_lat = jax.random.split(key, 5)

    B, P = 2, 64               # batch_size, num_pixels -> N = 128 points
    imp_params = init_implicit_params(k_imp)
    ren_params = init_rendering_params(k_ren)

    intrinsics = jnp.tile(
        jnp.array([[100., 0., 8., 0.],
                   [0., 100., 8., 0.],
                   [0., 0., 1., 0.],
                   [0., 0., 0., 1.]], jnp.float32)[None], (B, 1, 1))
    pose = jnp.tile(jnp.eye(4, dtype=jnp.float32)[None], (B, 1, 1))
    pose = pose.at[:, 2, 3].set(-2.5)                      # camera translated along -z
    uv = jax.random.uniform(k_uv, (B, P, 2), jnp.float32, 0.0, 16.0)
    object_mask = jax.random.bernoulli(k_mask, 0.5, (B, P))
    latent_code = jax.random.normal(k_lat, (1, LATENT_SIZE), jnp.float32)

    inputs = {'intrinsics': intrinsics, 'uv': uv, 'pose': pose,
              'object_mask': object_mask, 'obj': latent_code}

    out = idr_forward(inputs, imp_params, ren_params)
    jax.block_until_ready((out['points'], out['rgb_values'], out['sdf_output'],
                           out['network_object_mask'], out['deformation'],
                           out['correction']))
    assert out['points'].shape == (B * P, 3)
    assert out['rgb_values'].shape == (B * P, 3)
    assert out['sdf_output'].shape == (B * P, 1)
    print("KERNEL_OK")
</pallas_src>

<mosaic_0001>
module attributes {stable_mosaic.version = 11 : i64} {
  func.func @fused_mlp_kernel(%arg0: i32, %arg1: memref<3x128xf32, #tpu.memory_space<vmem>>, %arg2: memref<96x3xf32, #tpu.memory_space<vmem>>, %arg3: memref<120x32xf32, #tpu.memory_space<vmem>>, %arg4: memref<32x8xf32, #tpu.memory_space<vmem>>, %arg5: memref<184x1xf32, #tpu.memory_space<vmem>>, %arg6: memref<4x128xf32, #tpu.memory_space<vmem>>) attributes {dimension_semantics = [#tpu.dimension_semantics<parallel>], iteration_bounds = array<i64: 1>, scalar_prefetch = 0 : i64, scratch_operands = 0 : i64, tpu.core_type = #tpu.core_type<tc>, window_params = [{transform_indices = @transform_0, window_bounds = array<i64: 3, 128>}, {pipeline_mode = #tpu.pipeline_mode<synchronous>, transform_indices = @transform_1, window_bounds = array<i64: 96, 3>}, {pipeline_mode = #tpu.pipeline_mode<synchronous>, transform_indices = @transform_2, window_bounds = array<i64: 120, 32>}, {pipeline_mode = #tpu.pipeline_mode<synchronous>, transform_indices = @transform_3, window_bounds = array<i64: 32, 8>}, {pipeline_mode = #tpu.pipeline_mode<synchronous>, transform_indices = @transform_4, window_bounds = array<i64: 184, 1>}, {transform_indices = @transform_5, window_bounds = array<i64: 4, 128>}]} {
    %c0 = arith.constant 0 : index
    %c0_0 = arith.constant 0 : index
    %0 = vector.load %arg1[%c0, %c0_0] : memref<3x128xf32, #tpu.memory_space<vmem>>, vector<3x128xf32>
    %c0_1 = arith.constant 0 : index
    %c0_2 = arith.constant 0 : index
    %1 = vector.load %arg3[%c0_1, %c0_2] : memref<120x32xf32, #tpu.memory_space<vmem>>, vector<120x32xf32>
    %c0_3 = arith.constant 0 : index
    %c0_4 = arith.constant 0 : index
    %2 = vector.load %arg5[%c0_3, %c0_4] : memref<184x1xf32, #tpu.memory_space<vmem>>, vector<184x1xf32>
    %c0_5 = arith.constant 0 : index
    %c0_6 = arith.constant 0 : index
    %3 = vector.load %arg2[%c0_5, %c0_6] : memref<96x3xf32, #tpu.memory_space<vmem>>, vector<96x3xf32>
    %cst = arith.constant dense<0.000000e+00> : vector<96x128xf32>
    %4 = tpu.matmul %3, %0, %cst {dimension_numbers = #tpu.dot_dimension_numbers<[1], [0], [0], [1], [0, 0, 1, 1], [], []>} : vector<96x3xf32>, vector<3x128xf32>, vector<96x128xf32> -> vector<96x128xf32>
    %5 = vector.extract_strided_slice %4 {offsets = [0, 0], sizes = [32, 128], strides = [1, 1]} : vector<96x128xf32> to vector<32x128xf32>
    %6 = vector.extract_strided_slice %2 {offsets = [0, 0], sizes = [32, 1], strides = [1, 1]} : vector<184x1xf32> to vector<32x1xf32>
    %7 = vector.broadcast %6 : vector<32x1xf32> to vector<32x128xf32>
    %8 = arith.addf %5, %7 : vector<32x128xf32>
    %cst_7 = arith.constant 1.000000e+02 : f32
    %9 = vector.broadcast %cst_7 : f32 to vector<32x128xf32>
    %10 = arith.mulf %9, %8 : vector<32x128xf32>
    %cst_8 = arith.constant 2.000000e+01 : f32
    %11 = vector.broadcast %cst_8 : f32 to vector<32x128xf32>
    %12 = arith.minimumf %10, %11 : vector<32x128xf32>
    %13 = math.exp %12 : vector<32x128xf32>
    %14 = math.log1p %13 : vector<32x128xf32>
    %cst_9 = arith.constant 0.00999999977 : f32
    %15 = vector.broadcast %cst_9 : f32 to vector<32x128xf32>
    %16 = arith.mulf %14, %15 : vector<32x128xf32>
    %cst_10 = arith.constant 2.000000e+01 : f32
    %17 = vector.broadcast %cst_10 : f32 to vector<32x128xf32>
    %18 = arith.cmpf ogt, %10, %17 : vector<32x128xf32>
    %19 = arith.select %18, %8, %16 : vector<32x128xi1>, vector<32x128xf32>
    %20 = vector.extract_strided_slice %1 {offsets = [0, 0], sizes = [32, 32], strides = [1, 1]} : vector<120x32xf32> to vector<32x32xf32>
    %cst_11 = arith.constant dense<0.000000e+00> : vector<32x128xf32>
    %21 = tpu.matmul %20, %19, %cst_11 {dimension_numbers = #tpu.dot_dimension_numbers<[1], [0], [0], [1], [0, 0, 1, 1], [], []>} : vector<32x32xf32>, vector<32x128xf32>, vector<32x128xf32> -> vector<32x128xf32>
    %22 = vector.extract_strided_slice %2 {offsets = [32, 0], sizes = [32, 1], strides = [1, 1]} : vector<184x1xf32> to vector<32x1xf32>
    %23 = vector.broadcast %22 : vector<32x1xf32> to vector<32x128xf32>
    %24 = arith.addf %21, %23 : vector<32x128xf32>
    %cst_12 = arith.constant 1.000000e+02 : f32
    %25 = vector.broadcast %cst_12 : f32 to vector<32x128xf32>
    %26 = arith.mulf %25, %24 : vector<32x128xf32>
    %cst_13 = arith.constant 2.000000e+01 : f32
    %27 = vector.broadcast %cst_13 : f32 to vector<32x128xf32>
    %28 = arith.minimumf %26, %27 : vector<32x128xf32>
    %29 = math.exp %28 : vector<32x128xf32>
    %30 = math.log1p %29 : vector<32x128xf32>
    %cst_14 = arith.constant 0.00999999977 : f32
    %31 = vector.broadcast %cst_14 : f32 to vector<32x128xf32>
    %32 = arith.mulf %30, %31 : vector<32x128xf32>
    %cst_15 = arith.constant 2.000000e+01 : f32
    %33 = vector.broadcast %cst_15 : f32 to vector<32x128xf32>
    %34 = arith.cmpf ogt, %26, %33 : vector<32x128xf32>
    %35 = arith.select %34, %24, %32 : vector<32x128xi1>, vector<32x128xf32>
    %36 = vector.extract_strided_slice %1 {offsets = [32, 0], sizes = [32, 32], strides = [1, 1]} : vector<120x32xf32> to vector<32x32xf32>
    %cst_16 = arith.constant dense<0.000000e+00> : vector<32x128xf32>
    %37 = tpu.matmul %36, %35, %cst_16 {dimension_numbers = #tpu.dot_dimension_numbers<[1], [0], [0], [1], [0, 0, 1, 1], [], []>} : vector<32x32xf32>, vector<32x128xf32>, vector<32x128xf32> -> vector<32x128xf32>
    %38 = vector.extract_strided_slice %4 {offsets = [32, 0], sizes = [32, 128], strides = [1, 1]} : vector<96x128xf32> to vector<32x128xf32>
    %39 = arith.addf %37, %38 : vector<32x128xf32>
    %40 = vector.extract_strided_slice %2 {offsets = [64, 0], sizes = [32, 1], strides = [1, 1]} : vector<184x1xf32> to vector<32x1xf32>
    %41 = vector.broadcast %40 : vector<32x1xf32> to vector<32x128xf32>
    %42 = arith.addf %39, %41 : vector<32x128xf32>
    %cst_17 = arith.constant 1.000000e+02 : f32
    %43 = vector.broadcast %cst_17 : f32 to vector<32x128xf32>
    %44 = arith.mulf %43, %42 : vector<32x128xf32>
    %cst_18 = arith.constant 2.000000e+01 : f32
    %45 = vector.broadcast %cst_18 : f32 to vector<32x128xf32>
    %46 = arith.minimumf %44, %45 : vector<32x128xf32>
    %47 = math.exp %46 : vector<32x128xf32>
    %48 = math.log1p %47 : vector<32x128xf32>
    %cst_19 = arith.constant 0.00999999977 : f32
    %49 = vector.broadcast %cst_19 : f32 to vector<32x128xf32>
    %50 = arith.mulf %48, %49 : vector<32x128xf32>
    %cst_20 = arith.constant 2.000000e+01 : f32
    %51 = vector.broadcast %cst_20 : f32 to vector<32x128xf32>
    %52 = arith.cmpf ogt, %44, %51 : vector<32x128xf32>
    %53 = arith.select %52, %42, %50 : vector<32x128xi1>, vector<32x128xf32>
    %54 = vector.extract_strided_slice %1 {offsets = [64, 0], sizes = [9, 32], strides = [1, 1]} : vector<120x32xf32> to vector<9x32xf32>
    %cst_21 = arith.constant dense<0.000000e+00> : vector<9x128xf32>
    %55 = tpu.matmul %54, %53, %cst_21 {dimension_numbers = #tpu.dot_dimension_numbers<[1], [0], [0], [1], [0, 0, 1, 1], [], []>} : vector<9x32xf32>, vector<32x128xf32>, vector<9x128xf32> -> vector<9x128xf32>
    %56 = vector.extract_strided_slice %2 {offsets = [96, 0], sizes = [9, 1], strides = [1, 1]} : vector<184x1xf32> to vector<9x1xf32>
    %57 = vector.broadcast %56 : vector<9x1xf32> to vector<9x128xf32>
    %58 = arith.addf %55, %57 : vector<9x128xf32>
    %59 = vector.extract_strided_slice %58 {offsets = [0, 0], sizes = [1, 128], strides = [1, 1]} : vector<9x128xf32> to vector<1x128xf32>
    %60 = vector.extract_strided_slice %58 {offsets = [1, 0], sizes = [8, 128], strides = [1, 1]} : vector<9x128xf32> to vector<8x128xf32>
    %c0_22 = arith.constant 0 : index
    %c0_23 = arith.constant 0 : index
    %61 = vector.load %arg4[%c0_22, %c0_23] : memref<32x8xf32, #tpu.memory_space<vmem>>, vector<32x8xf32>
    %cst_24 = arith.constant dense<0.000000e+00> : vector<32x128xf32>
    %62 = tpu.matmul %61, %60, %cst_24 {dimension_numbers = #tpu.dot_dimension_numbers<[1], [0], [0], [1], [0, 0, 1, 1], [], []>} : vector<32x8xf32>, vector<8x128xf32>, vector<32x128xf32> -> vector<32x128xf32>
    %63 = vector.extract_strided_slice %4 {offsets = [64, 0], sizes = [32, 128], strides = [1, 1]} : vector<96x128xf32> to vector<32x128xf32>
    %64 = arith.addf %62, %63 : vector<32x128xf32>
    %65 = vector.extract_strided_slice %2 {offsets = [112, 0], sizes = [32, 1], strides = [1, 1]} : vector<184x1xf32> to vector<32x1xf32>
    %66 = vector.broadcast %65 : vector<32x1xf32> to vector<32x128xf32>
    %67 = arith.addf %64, %66 : vector<32x128xf32>
    %cst_25 = arith.constant 0.000000e+00 : f32
    %68 = vector.broadcast %cst_25 : f32 to vector<32x128xf32>
    %69 = arith.maximumf %67, %68 : vector<32x128xf32>
    %70 = vector.extract_strided_slice %1 {offsets = [80, 0], sizes = [32, 32], strides = [1, 1]} : vector<120x32xf32> to vector<32x32xf32>
    %cst_26 = arith.constant dense<0.000000e+00> : vector<32x128xf32>
    %71 = tpu.matmul %70, %69, %cst_26 {dimension_numbers = #tpu.dot_dimension_numbers<[1], [0], [0], [1], [0, 0, 1, 1], [], []>} : vector<32x32xf32>, vector<32x128xf32>, vector<32x128xf32> -> vector<32x128xf32>
    %72 = vector.extract_strided_slice %2 {offsets = [144, 0], sizes = [32, 1], strides = [1, 1]} : vector<184x1xf32> to vector<32x1xf32>
    %73 = vector.broadcast %72 : vector<32x1xf32> to vector<32x128xf32>
    %74 = arith.addf %71, %73 : vector<32x128xf32>
    %cst_27 = arith.constant 0.000000e+00 : f32
    %75 = vector.broadcast %cst_27 : f32 to vector<32x128xf32>
    %76 = arith.maximumf %74, %75 : vector<32x128xf32>
    %77 = vector.extract_strided_slice %1 {offsets = [112, 0], sizes = [3, 32], strides = [1, 1]} : vector<120x32xf32> to vector<3x32xf32>
    %cst_28 = arith.constant dense<0.000000e+00> : vector<3x128xf32>
    %78 = tpu.matmul %77, %76, %cst_28 {dimension_numbers = #tpu.dot_dimension_numbers<[1], [0], [0], [1], [0, 0, 1, 1], [], []>} : vector<3x32xf32>, vector<32x128xf32>, vector<3x128xf32> -> vector<3x128xf32>
    %79 = vector.extract_strided_slice %2 {offsets = [176, 0], sizes = [3, 1], strides = [1, 1]} : vector<184x1xf32> to vector<3x1xf32>
    %80 = vector.broadcast %79 : vector<3x1xf32> to vector<3x128xf32>
    %81 = arith.addf %78, %80 : vector<3x128xf32>
    %82 = math.tanh %81 : vector<3x128xf32>
    %83 = tpu.concatenate %59, %82 in 0 : vector<1x128xf32>, vector<3x128xf32> -> vector<4x128xf32>
    %c0_29 = arith.constant 0 : index
    %c0_30 = arith.constant 0 : index
    %84 = vector.load %arg6[%c0_29, %c0_30] : memref<4x128xf32, #tpu.memory_space<vmem>>, vector<4x128xf32>
    tpu.vector_store %arg6[%c0_29, %c0_30], %83 {strides = array<i32>} : memref<4x128xf32, #tpu.memory_space<vmem>>, vector<4x128xf32>,
    return
  }
  func.func @transform_0(%arg0: i32) -> (i32, i32) {
    %c0_i32 = arith.constant 0 : i32
    %c0_i32_0 = arith.constant 0 : i32
    return %c0_i32, %arg0 : i32, i32
  }
  func.func @transform_1(%arg0: i32) -> (i32, i32) {
    %c0_i32 = arith.constant 0 : i32
    %c0_i32_0 = arith.constant 0 : i32
    %c0_i32_1 = arith.constant 0 : i32
    return %c0_i32, %c0_i32_0 : i32, i32
  }
  func.func @transform_2(%arg0: i32) -> (i32, i32) {
    %c0_i32 = arith.constant 0 : i32
    %c0_i32_0 = arith.constant 0 : i32
    %c0_i32_1 = arith.constant 0 : i32
    return %c0_i32, %c0_i32_0 : i32, i32
  }
  func.func @transform_3(%arg0: i32) -> (i32, i32) {
    %c0_i32 = arith.constant 0 : i32
    %c0_i32_0 = arith.constant 0 : i32
    %c0_i32_1 = arith.constant 0 : i32
    return %c0_i32, %c0_i32_0 : i32, i32
  }
  func.func @transform_4(%arg0: i32) -> (i32, i32) {
    %c0_i32 = arith.constant 0 : i32
    %c0_i32_0 = arith.constant 0 : i32
    %c0_i32_1 = arith.constant 0 : i32
    return %c0_i32, %c0_i32_0 : i32, i32
  }
  func.func @transform_5(%arg0: i32) -> (i32, i32) {
    %c0_i32 = arith.constant 0 : i32
    %c0_i32_0 = arith.constant 0 : i32
    return %c0_i32, %arg0 : i32, i32
  }
}

</mosaic_0001>

<llo_original>
// kernel: tpu_custom_call.1
$region0: #{tpu_custom_call.1}
  #allocation0 [shape = 'u32[]', space=smem, size = 0x4, offset = 0x4, fixed_abs, tag = 'smem constant byte address 0x4 - core index']
  #allocation1 [shape = 'u32[144,128]{1,0:T(1,128)}', space=vmem, size = 0x12000, scoped, tag = 'internal scratch']
  %s0 = inlined_call_operand.vmem [shape: f32[3,128], index: 0, kind: input, shape index: {}]
  %s1 = inlined_call_operand.vmem [shape: f32[96,3], index: 1, kind: input, shape index: {}]
  %s2 = inlined_call_operand.vmem [shape: f32[120,32], index: 2, kind: input, shape index: {}]
  %s3 = inlined_call_operand.vmem [shape: f32[32,8], index: 3, kind: input, shape index: {}]
  %s4 = inlined_call_operand.vmem [shape: f32[184,1], index: 4, kind: input, shape index: {}]
  %s5 = inlined_call_operand.hbm [shape: f32[4,128], index: 5, kind: output, shape index: {}]
  %s6 = sld [smem:[#allocation0]]
  $region30: #{tpu_custom_call.1} parent=0
    _
  %s8 = ssub.s32 1, %s6
  %s9 = scalar_select 0, %s8, %s6
  $region1: #{tpu_custom_call.1} parent=0
    #allocation2 [shape = 'u8[2048]{0}', space=vmem, size = 0x800, scoped, tag = 'output window, operand 0, single buffered']
    #allocation3 [shape = 's32[1]{0}', space=sflag, size = 0x4, scoped, tag = 'scoped memory for tpu_custom_call.1']
    %10 = vsyncpa [#allocation3], 0
    // Predicated region
    $region2: #{tpu_custom_call.1} parent=1 // pred_check
      _
    $region3: #{tpu_custom_call.1} parent=1 // pred_check_branch
      %12 = sbr.rel (0) target = $region5
    $region4: #{tpu_custom_call.1} parent=1 // pred_region
      _
    $region5: #{tpu_custom_call.1} parent=1 // pred_fallthru
      _
    // Predicated region
    $region6: #{tpu_custom_call.1} parent=1 // pred_check
      _
    $region7: #{tpu_custom_call.1} parent=1 // pred_check_branch
      %14 = sbr.rel (0) target = $region9
    $region8: #{tpu_custom_call.1} parent=1 // pred_region
      _
    $region9: #{tpu_custom_call.1} parent=1 // pred_fallthru
      _
    // Predicated region
    $region10: #{tpu_custom_call.1} parent=1 // pred_check
      _
    $region11: #{tpu_custom_call.1} parent=1 // pred_check_branch
      %16 = sbr.rel (0) target = $region13
    $region12: #{tpu_custom_call.1} parent=1 // pred_region
      _
    $region13: #{tpu_custom_call.1} parent=1 // pred_fallthru
      _
    // Predicated region
    $region14: #{tpu_custom_call.1} parent=1 // pred_check
      _
    $region15: #{tpu_custom_call.1} parent=1 // pred_check_branch
      %18 = sbr.rel (0) target = $region17
    $region16: #{tpu_custom_call.1} parent=1 // pred_region
      _
    $region17: #{tpu_custom_call.1} parent=1 // pred_fallthru
      _
    // Predicated region
    $region18: #{tpu_custom_call.1} parent=1 // pred_check
      _
    $region19: #{tpu_custom_call.1} parent=1 // pred_check_branch
      %20 = sbr.rel (0) target = $region21
    $region20: #{tpu_custom_call.1} parent=1 // pred_region
      _
    $region21: #{tpu_custom_call.1} parent=1 // pred_fallthru
      _
    %v21 = vld [vmem:[%s0] sm:$0x7]
    %v22 = vld [vmem:[%s2] sm:$0xff]
    %v23 = vld [vmem:[%s2 + $0x8] sm:$0xff]
    %v24 = vld [vmem:[%s2 + $0x10] sm:$0xff]
    %v25 = vld [vmem:[%s2 + $0x18] sm:$0xff]
    %v26 = vld [vmem:[%s2 + $0x20] sm:$0xff]
    %v27 = vld [vmem:[%s2 + $0x28] sm:$0xff]
    %v28 = vld [vmem:[%s2 + $0x30] sm:$0xff]
    %v29 = vld [vmem:[%s2 + $0x38] sm:$0xff]
    %v30 = vld [vmem:[%s2 + $0x40] sm:$0xff]
    %v31 = vld [vmem:[%s2 + $0x48] sm:$0xff]
    %v32 = vld [vmem:[%s2 + $0x50] sm:$0xff]
    %v33 = vld [vmem:[%s2 + $0x58] sm:$0xff]
    %v34 = vld [vmem:[%s2 + $0x60] sm:$0xff]
    %v35 = vld [vmem:[%s2 + $0x68] sm:$0xff]
    %v36 = vld [vmem:[%s2 + $0x70] sm:$0xff]
    %v37 = vld [vmem:[%s4] sm:$0xff]
    %v38 = vld [vmem:[%s4 + $0x8] sm:$0xff]
    %v39 = vld [vmem:[%s4 + $0x10] sm:$0xff]
    %v40 = vld [vmem:[%s4 + $0x18] sm:$0xff]
    %v41 = vld [vmem:[%s4 + $0x20] sm:$0xff]
    %v42 = vld [vmem:[%s4 + $0x28] sm:$0xff]
    %v43 = vld [vmem:[%s4 + $0x30] sm:$0xff]
    %v44 = vld [vmem:[%s4 + $0x38] sm:$0xff]
    %v45 = vld [vmem:[%s4 + $0x40] sm:$0xff]
    %v46 = vld [vmem:[%s4 + $0x48] sm:$0xff]
    %v47 = vld [vmem:[%s4 + $0x50] sm:$0xff]
    %v48 = vld [vmem:[%s4 + $0x58] sm:$0xff]
    %v49 = vld [vmem:[%s4 + $0x60] sm:$0xff]
    %v50 = vld [vmem:[%s4 + $0x68] sm:$0xff]
    %v51 = vld [vmem:[%s4 + $0x70] sm:$0xff]
    %v52 = vld [vmem:[%s4 + $0x78] sm:$0xff]
    %v53 = vld [vmem:[%s4 + $0x80] sm:$0xff]
    %v54 = vld [vmem:[%s4 + $0x88] sm:$0xff]
    %v55 = vld [vmem:[%s4 + $0x90] sm:$0xff]
    %v56 = vld [vmem:[%s4 + $0x98] sm:$0xff]
    %v57 = vld [vmem:[%s4 + $0xa0] sm:$0xff]
    %v58 = vld [vmem:[%s4 + $0xa8] sm:$0xff]
    %v59 = vld [vmem:[%s4 + $0xb0] sm:$0xff]
    %v60 = vld [vmem:[%s1] sm:$0xff]
    %v61 = vld [vmem:[%s1 + $0x8] sm:$0xff]
    %v62 = vld [vmem:[%s1 + $0x10] sm:$0xff]
    %v63 = vld [vmem:[%s1 + $0x18] sm:$0xff]
    %v64 = vld [vmem:[%s1 + $0x20] sm:$0xff]
    %v65 = vld [vmem:[%s1 + $0x28] sm:$0xff]
    %v66 = vld [vmem:[%s1 + $0x30] sm:$0xff]
    %v67 = vld [vmem:[%s1 + $0x38] sm:$0xff]
    %v68 = vld [vmem:[%s1 + $0x40] sm:$0xff]
    %v69 = vld [vmem:[%s1 + $0x48] sm:$0xff]
    %v70 = vld [vmem:[%s1 + $0x50] sm:$0xff]
    %v71 = vld [vmem:[%s1 + $0x58] sm:$0xff]
    %vm72 = vcmask 23552
    %v74 = vsel %vm72, %v60, 0
    %v77 = vsel %vm72, %v61, 0
    %v80 = vsel %vm72, %v62, 0
    %v83 = vsel %vm72, %v63, 0
    %v86 = vsel %vm72, %v64, 0
    %v89 = vsel %vm72, %v65, 0
    %v92 = vsel %vm72, %v66, 0
    %v95 = vsel %vm72, %v67, 0
    %v98 = vsel %vm72, %v68, 0
    %v101 = vsel %vm72, %v69, 0
    %v104 = vsel %vm72, %v70, 0
    %v107 = vsel %vm72, %v71, 0
    %vm109 = vcmask 1042432
    %v111 = vsel %vm109, %v21, 0
    %113 = vmatprep.subr.mxu0 0.0
    %114 = vmatpush1.msra.mxu0 0.0
    %115 = vmatprep.subr.mxu0 0.0
    %116 = vmatpush1.msra.mxu0 0.0
    %117 = vmatprep.subr.mxu0 0.0
    %118 = vmatpush1.msra.mxu0 0.0
    %119 = vmatprep.subr.mxu0 0.0
    %120 = vmatpush1.msra.mxu0 0.0
    %121 = vmatprep.subr.mxu0 0.0
    %122 = vmatpush1.msra.mxu0 0.0
    %123 = vmatprep.subr.mxu0 0.0
    %124 = vmatpush1.msra.mxu0 0.0
    %125 = vmatprep.subr.mxu0 0.0
    %126 = vmatpush1.msra.mxu0 0.0
    %127 = vmatprep.subr.mxu0 0.0
    %128 = vmatpush1.msra.mxu0 0.0
    %129 = vmatprep.subr.mxu0 0.0
    %130 = vmatpush1.msra.mxu0 0.0
    %131 = vmatprep.subr.mxu0 0.0
    %132 = vmatpush1.msra.mxu0 0.0
    %133 = vmatprep.subr.mxu0 0.0
    %134 = vmatpush1.msra.mxu0 0.0
    %135 = vmatprep.subr.mxu0 0.0
    %136 = vmatpush1.msra.mxu0 0.0
    %137 = vmatprep.subr.mxu0 0.0
    %138 = vmatpush1.msra.mxu0 0.0
    %139 = vmatprep.subr.mxu0 0.0
    %140 = vmatpush1.msra.mxu0 0.0
    %141 = vmatprep.subr.mxu0 0.0
    %142 = vmatpush1.msra.mxu0 0.0
    %143 = vmatprep.subr.mxu0 0.0
    %144 = vmatpush1.msra.mxu0 %v111
    %145 = vmatprep.subr.mxu0 0.0
    %146 = vmatpush2.msra.mxu0 0.0
    %147 = vmatprep.subr.mxu0 0.0
    %148 = vmatpush2.msra.mxu0 0.0
    %149 = vmatprep.subr.mxu0 0.0
    %150 = vmatpush2.msra.mxu0 0.0
    %151 = vmatprep.subr.mxu0 0.0
    %152 = vmatpush2.msra.mxu0 0.0
    %153 = vmatprep.subr.mxu0 0.0
    %154 = vmatpush2.msra.mxu0 0.0
    %155 = vmatprep.subr.mxu0 0.0
    %156 = vmatpush2.msra.mxu0 0.0
    %157 = vmatprep.subr.mxu0 0.0
    %158 = vmatpush2.msra.mxu0 0.0
    %159 = vmatprep.subr.mxu0 0.0
    %160 = vmatpush2.msra.mxu0 0.0
    %161 = vmatprep.subr.mxu0 0.0
    %162 = vmatpush2.msra.mxu0 0.0
    %163 = vmatprep.subr.mxu0 0.0
    %164 = vmatpush2.msra.mxu0 0.0
    %165 = vmatprep.subr.mxu0 0.0
    %166 = vmatpush2.msra.mxu0 0.0
    %167 = vmatprep.subr.mxu0 0.0
    %168 = vmatpush2.msra.mxu0 0.0
    %169 = vmatprep.subr.mxu0 0.0
    %170 = vmatpush2.msra.mxu0 0.0
    %171 = vmatprep.subr.mxu0 0.0
    %172 = vmatpush2.msra.mxu0 0.0
    %173 = vmatprep.subr.mxu0 0.0
    %174 = vmatpush2.msra.mxu0 0.0
    %175 = vmatprep.subr.mxu0 0.0
    %176 = vmatpush2.msra.mxu0 0.0
    %177 = vmatprep.mubr.f32.mxu0 0.0
    %178 = vmatmul.mubr.f32.gmra.mxu0 %v74
    %v179 = vpop.f32.mrf.mxu0
    %v180 = vadd.f32 0.0, %v179
    %v181 = vpop.f32.mrf.mxu0
    %182 = vmatprep.mubr.f32.mxu0 0.0
    %183 = vmatmul.mubr.f32.gmra.mxu0 %v77
    %v184 = vpop.f32.mrf.mxu0
    %v185 = vadd.f32 0.0, %v184
    %v186 = vpop.f32.mrf.mxu0
    %187 = vmatprep.mubr.f32.mxu0 0.0
    %188 = vmatmul.mubr.f32.gmra.mxu0 %v80
    %v189 = vpop.f32.mrf.mxu0
    %v190 = vadd.f32 0.0, %v189
    %v191 = vpop.f32.mrf.mxu0
    %192 = vmatprep.mubr.f32.mxu0 0.0
    %193 = vmatmul.mubr.f32.gmra.mxu0 %v83
    %v194 = vpop.f32.mrf.mxu0
    %v195 = vadd.f32 0.0, %v194
    %v196 = vpop.f32.mrf.mxu0
    %197 = vmatprep.mubr.f32.mxu0 0.0
    %198 = vmatmul.mubr.f32.gmra.mxu0 %v86
    %v199 = vpop.f32.mrf.mxu0
    %v200 = vadd.f32 0.0, %v199
    %v201 = vpop.f32.mrf.mxu0
    %202 = vmatprep.mubr.f32.mxu0 0.0
    %203 = vmatmul.mubr.f32.gmra.mxu0 %v89
    %v204 = vpop.f32.mrf.mxu0
    %v205 = vadd.f32 0.0, %v204
    %v206 = vpop.f32.mrf.mxu0
    %207 = vmatprep.mubr.f32.mxu0 0.0
    %208 = vmatmul.mubr.f32.gmra.mxu0 %v92
    %v209 = vpop.f32.mrf.mxu0
    %v210 = vadd.f32 0.0, %v209
    %v211 = vpop.f32.mrf.mxu0
    %212 = vmatprep.mubr.f32.mxu0 0.0
    %213 = vmatmul.mubr.f32.gmra.mxu0 %v95
    %v214 = vpop.f32.mrf.mxu0
    %v215 = vadd.f32 0.0, %v214
    %v216 = vpop.f32.mrf.mxu0
    %217 = vmatprep.mubr.f32.mxu0 0.0
    %218 = vmatmul.mubr.f32.gmra.mxu0 %v98
    %v219 = vpop.f32.mrf.mxu0
    %v220 = vadd.f32 0.0, %v219
    %v221 = vpop.f32.mrf.mxu0
    %222 = vmatprep.mubr.f32.mxu0 0.0
    %223 = vmatmul.mubr.f32.gmra.mxu0 %v101
    %v224 = vpop.f32.mrf.mxu0
    %v225 = vadd.f32 0.0, %v224
    %v226 = vpop.f32.mrf.mxu0
    %227 = vmatprep.mubr.f32.mxu0 0.0
    %228 = vmatmul.mubr.f32.gmra.mxu0 %v104
    %v229 = vpop.f32.mrf.mxu0
    %v230 = vadd.f32 0.0, %v229
    %v231 = vpop.f32.mrf.mxu0
    %232 = vmatprep.mubr.f32.mxu0 0.0
    %233 = vmatmul.mubr.f32.gmra.mxu0 %v107
    %v234 = vpop.f32.mrf.mxu0
    %v235 = vadd.f32 0.0, %v234
    %v236 = vpop.f32.mrf.mxu0
    %237 = vdwg.mxu0
    %239 = vset.pattern.permute.xlu0 0
    %240 = vperm.xlu0 %239, %v37
    %v241 = vpop.permute.xlu0 %240
    %244 = vset.pattern.permute.xlu0 0
    %245 = vperm.xlu0 %244, %v38
    %v246 = vpop.permute.xlu0 %245
    %249 = vset.pattern.permute.xlu0 0
    %250 = vperm.xlu0 %249, %v39
    %v251 = vpop.permute.xlu0 %250
    %254 = vset.pattern.permute.xlu0 0
    %255 = vperm.xlu0 %254, %v40
    %v256 = vpop.permute.xlu0 %255
    %v258 = vadd.f32 %v180, %v241
    %v259 = vadd.f32 %v185, %v246
    %v260 = vadd.f32 %v190, %v251
    %v261 = vadd.f32 %v195, %v256
    %v262 = vmul.f32 %v258, 100.0
    %v263 = vmul.f32 %v259, 100.0
    %v264 = vmul.f32 %v260, 100.0
    %v265 = vmul.f32 %v261, 100.0
    %v266 = vmin.f32 %v262, 20.0
    %v267 = vmin.f32 %v263, 20.0
    %v268 = vmin.f32 %v264, 20.0
    %v269 = vmin.f32 %v265, 20.0
    %v270 = vmul.f32 %v266, 1.442695
    %v271 = vpow.pop %v270
    %v272 = vmul.f32 %v267, 1.442695
    %v273 = vpow.pop %v272
    %v274 = vmul.f32 %v268, 1.442695
    %v275 = vpow.pop %v274
    %v276 = vmul.f32 %v269, 1.442695
    %v277 = vpow.pop %v276
    %v278 = vadd.f32 %v271, 1.0
    %v279 = vlog2.pop %v278
    %v280 = vmul.f32 %v279, 0.6931472
    %v281 = vmul.f32 -0.5, %v271
    %v282 = vadd.f32 %v281, 1.0
    %v283 = vmul.f32 %v282, %v271
    %v284 = vand.u32 2147483647, %v271
    %vm285 = vcmp.lt.f32.partialorder %v284, 0.0004427343
    %v286 = vsel %vm285, %v283, %v280
    %v287 = vadd.f32 %v273, 1.0
    %v288 = vlog2.pop %v287
    %v289 = vmul.f32 %v288, 0.6931472
    %v290 = vmul.f32 -0.5, %v273
    %v291 = vadd.f32 %v290, 1.0
    %v292 = vmul.f32 %v291, %v273
    %v293 = vand.u32 2147483647, %v273
    %vm294 = vcmp.lt.f32.partialorder %v293, 0.0004427343
    %v295 = vsel %vm294, %v292, %v289
    %v296 = vadd.f32 %v275, 1.0
    %v297 = vlog2.pop %v296
    %v298 = vmul.f32 %v297, 0.6931472
    %v299 = vmul.f32 -0.5, %v275
    %v300 = vadd.f32 %v299, 1.0
    %v301 = vmul.f32 %v300, %v275
    %v302 = vand.u32 2147483647, %v275
    %vm303 = vcmp.lt.f32.partialorder %v302, 0.0004427343
    %v304 = vsel %vm303, %v301, %v298
    %v305 = vadd.f32 %v277, 1.0
    %v306 = vlog2.pop %v305
    %v307 = vmul.f32 %v306, 0.6931472
    %v308 = vmul.f32 -0.5, %v277
    %v309 = vadd.f32 %v308, 1.0
    %v310 = vmul.f32 %v309, %v277
    %v311 = vand.u32 2147483647, %v277
    %vm312 = vcmp.lt.f32.partialorder %v311, 0.0004427343
    %v313 = vsel %vm312, %v310, %v307
    %v314 = vmul.f32 %v286, 0.01
    %v315 = vmul.f32 %v295, 0.01
    %v316 = vmul.f32 %v304, 0.01
    %v317 = vmul.f32 %v313, 0.01
    %vm318 = vcmp.gt.f32.partialorder %v262, 20.0
    %vm319 = vcmp.gt.f32.partialorder %v263, 20.0
    %vm320 = vcmp.gt.f32.partialorder %v264, 20.0
    %vm321 = vcmp.gt.f32.partialorder %v265, 20.0
    %v322 = vsel %vm318, %v258, %v314
    %v323 = vsel %vm319, %v259, %v315
    %v324 = vsel %vm320, %v260, %v316
    %v325 = vsel %vm321, %v261, %v317
    %327 = vset.pattern.permute.xlu0 0
    %328 = vperm.xlu0 %327, %v41
    %v329 = vpop.permute.xlu0 %328
    %332 = vset.pattern.permute.xlu0 0
    %333 = vperm.xlu0 %332, %v42
    %v334 = vpop.permute.xlu0 %333
    %337 = vset.pattern.permute.xlu0 0
    %338 = vperm.xlu0 %337, %v43
    %v339 = vpop.permute.xlu0 %338
    %342 = vset.pattern.permute.xlu0 0
    %343 = vperm.xlu0 %342, %v44
    %v344 = vpop.permute.xlu0 %343
    %vm346 = vcmask 261120
    %v348 = vsel %vm346, %v22, 0
    %v351 = vsel %vm346, %v23, 0
    %v354 = vsel %vm346, %v24, 0
    %v357 = vsel %vm346, %v25, 0
    %359 = vmatprep.subr.mxu0 0.0
    %360 = vmatpush1.msra.mxu0 0.0
    %361 = vmatprep.subr.mxu0 0.0
    %362 = vmatpush1.msra.mxu0 0.0
    %363 = vmatprep.subr.mxu0 0.0
    %364 = vmatpush1.msra.mxu0 0.0
    %365 = vmatprep.subr.mxu0 0.0
    %366 = vmatpush1.msra.mxu0 0.0
    %367 = vmatprep.subr.mxu0 0.0
    %368 = vmatpush1.msra.mxu0 0.0
    %369 = vmatprep.subr.mxu0 0.0
    %370 = vmatpush1.msra.mxu0 0.0
    %371 = vmatprep.subr.mxu0 0.0
    %372 = vmatpush1.msra.mxu0 0.0
    %373 = vmatprep.subr.mxu0 0.0
    %374 = vmatpush1.msra.mxu0 0.0
    %375 = vmatprep.subr.mxu0 0.0
    %376 = vmatpush1.msra.mxu0 0.0
    %377 = vmatprep.subr.mxu0 0.0
    %378 = vmatpush1.msra.mxu0 0.0
    %379 = vmatprep.subr.mxu0 0.0
    %380 = vmatpush1.msra.mxu0 0.0
    %381 = vmatprep.subr.mxu0 0.0
    %382 = vmatpush1.msra.mxu0 0.0
    %383 = vmatprep.subr.mxu0 0.0
    %384 = vmatpush1.msra.mxu0 %v325
    %385 = vmatprep.subr.mxu0 0.0
    %386 = vmatpush1.msra.mxu0 %v324
    %387 = vmatprep.subr.mxu0 0.0
    %388 = vmatpush1.msra.mxu0 %v323
    %389 = vmatprep.subr.mxu0 0.0
    %390 = vmatpush1.msra.mxu0 %v322
    %391 = vmatprep.subr.mxu0 0.0
    %392 = vmatpush2.msra.mxu0 0.0
    %393 = vmatprep.subr.mxu0 0.0
    %394 = vmatpush2.msra.mxu0 0.0
    %395 = vmatprep.subr.mxu0 0.0
    %396 = vmatpush2.msra.mxu0 0.0
    %397 = vmatprep.subr.mxu0 0.0
    %398 = vmatpush2.msra.mxu0 0.0
    %399 = vmatprep.subr.mxu0 0.0
    %400 = vmatpush2.msra.mxu0 0.0
    %401 = vmatprep.subr.mxu0 0.0
    %402 = vmatpush2.msra.mxu0 0.0
    %403 = vmatprep.subr.mxu0 0.0
    %404 = vmatpush2.msra.mxu0 0.0
    %405 = vmatprep.subr.mxu0 0.0
    %406 = vmatpush2.msra.mxu0 0.0
    %407 = vmatprep.subr.mxu0 0.0
    %408 = vmatpush2.msra.mxu0 0.0
    %409 = vmatprep.subr.mxu0 0.0
    %410 = vmatpush2.msra.mxu0 0.0
    %411 = vmatprep.subr.mxu0 0.0
    %412 = vmatpush2.msra.mxu0 0.0
    %413 = vmatprep.subr.mxu0 0.0
    %414 = vmatpush2.msra.mxu0 0.0
    %415 = vmatprep.subr.mxu0 0.0
    %416 = vmatpush2.msra.mxu0 0.0
    %417 = vmatprep.subr.mxu0 0.0
    %418 = vmatpush2.msra.mxu0 0.0
    %419 = vmatprep.subr.mxu0 0.0
    %420 = vmatpush2.msra.mxu0 0.0
    %421 = vmatprep.subr.mxu0 0.0
    %422 = vmatpush2.msra.mxu0 0.0
    %423 = vmatprep.mubr.f32.mxu0 0.0
    %424 = vmatmul.mubr.f32.gmra.mxu0 %v348
    %v425 = vpop.f32.mrf.mxu0
    %v426 = vadd.f32 %v329, %v425
    %v427 = vpop.f32.mrf.mxu0
    %428 = vmatprep.mubr.f32.mxu0 0.0
    %429 = vmatmul.mubr.f32.gmra.mxu0 %v351
    %v430 = vpop.f32.mrf.mxu0
    %v431 = vadd.f32 %v334, %v430
    %v432 = vpop.f32.mrf.mxu0
    %433 = vmatprep.mubr.f32.mxu0 0.0
    %434 = vmatmul.mubr.f32.gmra.mxu0 %v354
    %v435 = vpop.f32.mrf.mxu0
    %v436 = vadd.f32 %v339, %v435
    %v437 = vpop.f32.mrf.mxu0
    %438 = vmatprep.mubr.f32.mxu0 0.0
    %439 = vmatmul.mubr.f32.gmra.mxu0 %v357
    %v440 = vpop.f32.mrf.mxu0
    %v441 = vadd.f32 %v344, %v440
    %v442 = vpop.f32.mrf.mxu0
    %443 = vdwg.mxu0
    %v444 = vmul.f32 %v426, 100.0
    %v445 = vmul.f32 %v431, 100.0
    %v446 = vmul.f32 %v436, 100.0
    %v447 = vmul.f32 %v441, 100.0
    %v448 = vmin.f32 %v444, 20.0
    %v449 = vmin.f32 %v445, 20.0
    %v450 = vmin.f32 %v446, 20.0
    %v451 = vmin.f32 %v447, 20.0
    %v452 = vmul.f32 %v448, 1.442695
    %v453 = vpow.pop %v452
    %v454 = vmul.f32 %v449, 1.442695
    %v455 = vpow.pop %v454
    %v456 = vmul.f32 %v450, 1.442695
    %v457 = vpow.pop %v456
    %v458 = vmul.f32 %v451, 1.442695
    %v459 = vpow.pop %v458
    %v460 = vadd.f32 %v453, 1.0
    %v461 = vlog2.pop %v460
    %v462 = vmul.f32 %v461, 0.6931472
    %v463 = vmul.f32 -0.5, %v453
    %v464 = vadd.f32 %v463, 1.0
    %v465 = vmul.f32 %v464, %v453
    %v466 = vand.u32 2147483647, %v453
    %vm467 = vcmp.lt.f32.partialorder %v466, 0.0004427343
    %v468 = vsel %vm467, %v465, %v462
    %v469 = vadd.f32 %v455, 1.0
    %v470 = vlog2.pop %v469
    %v471 = vmul.f32 %v470, 0.6931472
    %v472 = vmul.f32 -0.5, %v455
    %v473 = vadd.f32 %v472, 1.0
    %v474 = vmul.f32 %v473, %v455
    %v475 = vand.u32 2147483647, %v455
    %vm476 = vcmp.lt.f32.partialorder %v475, 0.0004427343
    %v477 = vsel %vm476, %v474, %v471
    %v478 = vadd.f32 %v457, 1.0
    %v479 = vlog2.pop %v478
    %v480 = vmul.f32 %v479, 0.6931472
    %v481 = vmul.f32 -0.5, %v457
    %v482 = vadd.f32 %v481, 1.0
    %v483 = vmul.f32 %v482, %v457
    %v484 = vand.u32 2147483647, %v457
    %vm485 = vcmp.lt.f32.partialorder %v484, 0.0004427343
    %v486 = vsel %vm485, %v483, %v480
    %v487 = vadd.f32 %v459, 1.0
    %v488 = vlog2.pop %v487
    %v489 = vmul.f32 %v488, 0.6931472
    %v490 = vmul.f32 -0.5, %v459
    %v491 = vadd.f32 %v490, 1.0
    %v492 = vmul.f32 %v491, %v459
    %v493 = vand.u32 2147483647, %v459
    %vm494 = vcmp.lt.f32.partialorder %v493, 0.0004427343
    %v495 = vsel %vm494, %v492, %v489
    %v496 = vmul.f32 %v468, 0.01
    %v497 = vmul.f32 %v477, 0.01
    %v498 = vmul.f32 %v486, 0.01
    %v499 = vmul.f32 %v495, 0.01
    %vm500 = vcmp.gt.f32.partialorder %v444, 20.0
    %vm501 = vcmp.gt.f32.partialorder %v445, 20.0
    %vm502 = vcmp.gt.f32.partialorder %v446, 20.0
    %vm503 = vcmp.gt.f32.partialorder %v447, 20.0
    %v504 = vsel %vm500, %v426, %v496
    %v505 = vsel %vm501, %v431, %v497
    %v506 = vsel %vm502, %v436, %v498
    %v507 = vsel %vm503, %v441, %v499
    %v509 = vsel %vm346, %v26, 0
    %v512 = vsel %vm346, %v27, 0
    %v515 = vsel %vm346, %v28, 0
    %v518 = vsel %vm346, %v29, 0
    %520 = vmatprep.subr.mxu0 0.0
    %521 = vmatpush1.msra.mxu0 0.0
    %522 = vmatprep.subr.mxu0 0.0
    %523 = vmatpush1.msra.mxu0 0.0
    %524 = vmatprep.subr.mxu0 0.0
    %525 = vmatpush1.msra.mxu0 0.0
    %526 = vmatprep.subr.mxu0 0.0
    %527 = vmatpush1.msra.mxu0 0.0
    %528 = vmatprep.subr.mxu0 0.0
    %529 = vmatpush1.msra.mxu0 0.0
    %530 = vmatprep.subr.mxu0 0.0
    %531 = vmatpush1.msra.mxu0 0.0
    %532 = vmatprep.subr.mxu0 0.0
    %533 = vmatpush1.msra.mxu0 0.0
    %534 = vmatprep.subr.mxu0 0.0
    %535 = vmatpush1.msra.mxu0 0.0
    %536 = vmatprep.subr.mxu0 0.0
    %537 = vmatpush1.msra.mxu0 0.0
    %538 = vmatprep.subr.mxu0 0.0
    %539 = vmatpush1.msra.mxu0 0.0
    %540 = vmatprep.subr.mxu0 0.0
    %541 = vmatpush1.msra.mxu0 0.0
    %542 = vmatprep.subr.mxu0 0.0
    %543 = vmatpush1.msra.mxu0 0.0
    %544 = vmatprep.subr.mxu0 0.0
    %545 = vmatpush1.msra.mxu0 %v507
    %546 = vmatprep.subr.mxu0 0.0
    %547 = vmatpush1.msra.mxu0 %v506
    %548 = vmatprep.subr.mxu0 0.0
    %549 = vmatpush1.msra.mxu0 %v505
    %550 = vmatprep.subr.mxu0 0.0
    %551 = vmatpush1.msra.mxu0 %v504
    %552 = vmatprep.subr.mxu0 0.0
    %553 = vmatpush2.msra.mxu0 0.0
    %554 = vmatprep.subr.mxu0 0.0
    %555 = vmatpush2.msra.mxu0 0.0
    %556 = vmatprep.subr.mxu0 0.0
    %557 = vmatpush2.msra.mxu0 0.0
    %558 = vmatprep.subr.mxu0 0.0
    %559 = vmatpush2.msra.mxu0 0.0
    %560 = vmatprep.subr.mxu0 0.0
    %561 = vmatpush2.msra.mxu0 0.0
    %562 = vmatprep.subr.mxu0 0.0
    %563 = vmatpush2.msra.mxu0 0.0
    %564 = vmatprep.subr.mxu0 0.0
    %565 = vmatpush2.msra.mxu0 0.0
    %566 = vmatprep.subr.mxu0 0.0
    %567 = vmatpush2.msra.mxu0 0.0
    %568 = vmatprep.subr.mxu0 0.0
    %569 = vmatpush2.msra.mxu0 0.0
    %570 = vmatprep.subr.mxu0 0.0
    %571 = vmatpush2.msra.mxu0 0.0
    %572 = vmatprep.subr.mxu0 0.0
    %573 = vmatpush2.msra.mxu0 0.0
    %574 = vmatprep.subr.mxu0 0.0
    %575 = vmatpush2.msra.mxu0 0.0
    %576 = vmatprep.subr.mxu0 0.0
    %577 = vmatpush2.msra.mxu0 0.0
    %578 = vmatprep.subr.mxu0 0.0
    %579 = vmatpush2.msra.mxu0 0.0
    %580 = vmatprep.subr.mxu0 0.0
    %581 = vmatpush2.msra.mxu0 0.0
    %582 = vmatprep.subr.mxu0 0.0
    %583 = vmatpush2.msra.mxu0 0.0
    %584 = vmatprep.mubr.f32.mxu0 0.0
    %585 = vmatmul.mubr.f32.gmra.mxu0 %v509
    %v586 = vpop.f32.mrf.mxu0
    %v587 = vadd.f32 %v200, %v586
    %v588 = vpop.f32.mrf.mxu0
    %589 = vmatprep.mubr.f32.mxu0 0.0
    %590 = vmatmul.mubr.f32.gmra.mxu0 %v512
    %v591 = vpop.f32.mrf.mxu0
    %v592 = vadd.f32 %v205, %v591
    %v593 = vpop.f32.mrf.mxu0
    %594 = vmatprep.mubr.f32.mxu0 0.0
    %595 = vmatmul.mubr.f32.gmra.mxu0 %v515
    %v596 = vpop.f32.mrf.mxu0
    %v597 = vadd.f32 %v210, %v596
    %v598 = vpop.f32.mrf.mxu0
    %599 = vmatprep.mubr.f32.mxu0 0.0
    %600 = vmatmul.mubr.f32.gmra.mxu0 %v518
    %v601 = vpop.f32.mrf.mxu0
    %v602 = vadd.f32 %v215, %v601
    %v603 = vpop.f32.mrf.mxu0
    %604 = vdwg.mxu0
    %606 = vset.pattern.permute.xlu0 0
    %607 = vperm.xlu0 %606, %v45
    %v608 = vpop.permute.xlu0 %607
    %611 = vset.pattern.permute.xlu0 0
    %612 = vperm.xlu0 %611, %v46
    %v613 = vpop.permute.xlu0 %612
    %616 = vset.pattern.permute.xlu0 0
    %617 = vperm.xlu0 %616, %v47
    %v618 = vpop.permute.xlu0 %617
    %621 = vset.pattern.permute.xlu0 0
    %622 = vperm.xlu0 %621, %v48
    %v623 = vpop.permute.xlu0 %622
    %v625 = vadd.f32 %v587, %v608
    %v626 = vadd.f32 %v592, %v613
    %v627 = vadd.f32 %v597, %v618
    %v628 = vadd.f32 %v602, %v623
    %v629 = vmul.f32 %v625, 100.0
    %v630 = vmul.f32 %v626, 100.0
    %v631 = vmul.f32 %v627, 100.0
    %v632 = vmul.f32 %v628, 100.0
    %v633 = vmin.f32 %v629, 20.0
    %v634 = vmin.f32 %v630, 20.0
    %v635 = vmin.f32 %v631, 20.0
    %v636 = vmin.f32 %v632, 20.0
    %v637 = vmul.f32 %v633, 1.442695
    %v638 = vpow.pop %v637
    %v639 = vmul.f32 %v634, 1.442695
    %v640 = vpow.pop %v639
    %v641 = vmul.f32 %v635, 1.442695
    %v642 = vpow.pop %v641
    %v643 = vmul.f32 %v636, 1.442695
    %v644 = vpow.pop %v643
    %v645 = vadd.f32 %v638, 1.0
    %v646 = vlog2.pop %v645
    %v647 = vmul.f32 %v646, 0.6931472
    %v648 = vmul.f32 -0.5, %v638
    %v649 = vadd.f32 %v648, 1.0
    %v650 = vmul.f32 %v649, %v638
    %v651 = vand.u32 2147483647, %v638
    %vm652 = vcmp.lt.f32.partialorder %v651, 0.0004427343
    %v653 = vsel %vm652, %v650, %v647
    %v654 = vadd.f32 %v640, 1.0
    %v655 = vlog2.pop %v654
    %v656 = vmul.f32 %v655, 0.6931472
    %v657 = vmul.f32 -0.5, %v640
    %v658 = vadd.f32 %v657, 1.0
    %v659 = vmul.f32 %v658, %v640
    %v660 = vand.u32 2147483647, %v640
    %vm661 = vcmp.lt.f32.partialorder %v660, 0.0004427343
    %v662 = vsel %vm661, %v659, %v656
    %v663 = vadd.f32 %v642, 1.0
    %v664 = vlog2.pop %v663
    %v665 = vmul.f32 %v664, 0.6931472
    %v666 = vmul.f32 -0.5, %v642
    %v667 = vadd.f32 %v666, 1.0
    %v668 = vmul.f32 %v667, %v642
    %v669 = vand.u32 2147483647, %v642
    %vm670 = vcmp.lt.f32.partialorder %v669, 0.0004427343
    %v671 = vsel %vm670, %v668, %v665
    %v672 = vadd.f32 %v644, 1.0
    %v673 = vlog2.pop %v672
    %v674 = vmul.f32 %v673, 0.6931472
    %v675 = vmul.f32 -0.5, %v644
    %v676 = vadd.f32 %v675, 1.0
    %v677 = vmul.f32 %v676, %v644
    %v678 = vand.u32 2147483647, %v644
    %vm679 = vcmp.lt.f32.partialorder %v678, 0.0004427343
    %v680 = vsel %vm679, %v677, %v674
    %v681 = vmul.f32 %v653, 0.01
    %v682 = vmul.f32 %v662, 0.01
    %v683 = vmul.f32 %v671, 0.01
    %v684 = vmul.f32 %v680, 0.01
    %vm685 = vcmp.gt.f32.partialorder %v629, 20.0
    %vm686 = vcmp.gt.f32.partialorder %v630, 20.0
    %vm687 = vcmp.gt.f32.partialorder %v631, 20.0
    %vm688 = vcmp.gt.f32.partialorder %v632, 20.0
    %v689 = vsel %vm685, %v625, %v681
    %v690 = vsel %vm686, %v626, %v682
    %v691 = vsel %vm687, %v627, %v683
    %v692 = vsel %vm688, %v628, %v684
    %694 = vset.pattern.permute.xlu0 0
    %695 = vperm.xlu0 %694, %v49
    %v696 = vpop.permute.xlu0 %695
    %699 = vset.pattern.permute.xlu0 0
    %700 = vperm.xlu0 %699, %v50
    %v701 = vpop.permute.xlu0 %700
    %v704 = vsel %vm346, %v30, 0
    %v707 = vsel %vm346, %v31, 0
    %709 = vmatprep.subr.mxu0 0.0
    %710 = vmatpush1.msra.mxu0 0.0
    %711 = vmatprep.subr.mxu0 0.0
    %712 = vmatpush1.msra.mxu0 0.0
    %713 = vmatprep.subr.mxu0 0.0
    %714 = vmatpush1.msra.mxu0 0.0
    %715 = vmatprep.subr.mxu0 0.0
    %716 = vmatpush1.msra.mxu0 0.0
    %717 = vmatprep.subr.mxu0 0.0
    %718 = vmatpush1.msra.mxu0 0.0
    %719 = vmatprep.subr.mxu0 0.0
    %720 = vmatpush1.msra.mxu0 0.0
    %721 = vmatprep.subr.mxu0 0.0
    %722 = vmatpush1.msra.mxu0 0.0
    %723 = vmatprep.subr.mxu0 0.0
    %724 = vmatpush1.msra.mxu0 0.0
    %725 = vmatprep.subr.mxu0 0.0
    %726 = vmatpush1.msra.mxu0 0.0
    %727 = vmatprep.subr.mxu0 0.0
    %728 = vmatpush1.msra.mxu0 0.0
    %729 = vmatprep.subr.mxu0 0.0
    %730 = vmatpush1.msra.mxu0 0.0
    %731 = vmatprep.subr.mxu0 0.0
    %732 = vmatpush1.msra.mxu0 0.0
    %733 = vmatprep.subr.mxu0 0.0
    %734 = vmatpush1.msra.mxu0 %v692
    %735 = vmatprep.subr.mxu0 0.0
    %736 = vmatpush1.msra.mxu0 %v691
    %737 = vmatprep.subr.mxu0 0.0
    %738 = vmatpush1.msra.mxu0 %v690
    %739 = vmatprep.subr.mxu0 0.0
    %740 = vmatpush1.msra.mxu0 %v689
    %741 = vmatprep.subr.mxu0 0.0
    %742 = vmatpush2.msra.mxu0 0.0
    %743 = vmatprep.subr.mxu0 0.0
    %744 = vmatpush2.msra.mxu0 0.0
    %745 = vmatprep.subr.mxu0 0.0
    %746 = vmatpush2.msra.mxu0 0.0
    %747 = vmatprep.subr.mxu0 0.0
    %748 = vmatpush2.msra.mxu0 0.0
    %749 = vmatprep.subr.mxu0 0.0
    %750 = vmatpush2.msra.mxu0 0.0
    %751 = vmatprep.subr.mxu0 0.0
    %752 = vmatpush2.msra.mxu0 0.0
    %753 = vmatprep.subr.mxu0 0.0
    %754 = vmatpush2.msra.mxu0 0.0
    %755 = vmatprep.subr.mxu0 0.0
    %756 = vmatpush2.msra.mxu0 0.0
    %757 = vmatprep.subr.mxu0 0.0
    %758 = vmatpush2.msra.mxu0 0.0
    %759 = vmatprep.subr.mxu0 0.0
    %760 = vmatpush2.msra.mxu0 0.0
    %761 = vmatprep.subr.mxu0 0.0
    %762 = vmatpush2.msra.mxu0 0.0
    %763 = vmatprep.subr.mxu0 0.0
    %764 = vmatpush2.msra.mxu0 0.0
    %765 = vmatprep.subr.mxu0 0.0
    %766 = vmatpush2.msra.mxu0 0.0
    %767 = vmatprep.subr.mxu0 0.0
    %768 = vmatpush2.msra.mxu0 0.0
    %769 = vmatprep.subr.mxu0 0.0
    %770 = vmatpush2.msra.mxu0 0.0
    %771 = vmatprep.subr.mxu0 0.0
    %772 = vmatpush2.msra.mxu0 0.0
    %773 = vmatprep.mubr.f32.mxu0 0.0
    %774 = vmatmul.mubr.f32.gmra.mxu0 %v704
    %v775 = vpop.f32.mrf.mxu0
    %v776 = vadd.f32 %v696, %v775
    %v777 = vpop.f32.mrf.mxu0
    %778 = vmatprep.mubr.f32.mxu0 0.0
    %779 = vmatmul.mubr.f32.gmra.mxu0 %v707
    %v780 = vpop.f32.mrf.mxu0
    %v781 = vadd.f32 %v701, %v780
    %v782 = vpop.f32.mrf.mxu0
    %783 = vdwg.mxu0
    %v784 = vld [vmem:[%s3] sm:$0xff]
    %v785 = vld [vmem:[%s3 + $0x8] sm:$0xff]
    %v786 = vld [vmem:[%s3 + $0x10] sm:$0xff]
    %v787 = vld [vmem:[%s3 + $0x18] sm:$0xff]
    %vm790 = vcmask 1046528
    %v791 = vrot.slane %v776, 1
    %v792 = vrot.slane %v781, 1
    %v793 = vsel %vm790, %v791, %v792
    %vm795 = vcmask 64512
    %v797 = vsel %vm795, %v784, 0
    %v800 = vsel %vm795, %v785, 0
    %v803 = vsel %vm795, %v786, 0
    %v806 = vsel %vm795, %v787, 0
    %808 = vmatprep.subr.mxu0 0.0
    %809 = vmatpush1.msra.mxu0 0.0
    %810 = vmatprep.subr.mxu0 0.0
    %811 = vmatpush1.msra.mxu0 0.0
    %812 = vmatprep.subr.mxu0 0.0
    %813 = vmatpush1.msra.mxu0 0.0
    %814 = vmatprep.subr.mxu0 0.0
    %815 = vmatpush1.msra.mxu0 0.0
    %816 = vmatprep.subr.mxu0 0.0
    %817 = vmatpush1.msra.mxu0 0.0
    %818 = vmatprep.subr.mxu0 0.0
    %819 = vmatpush1.msra.mxu0 0.0
    %820 = vmatprep.subr.mxu0 0.0
    %821 = vmatpush1.msra.mxu0 0.0
    %822 = vmatprep.subr.mxu0 0.0
    %823 = vmatpush1.msra.mxu0 0.0
    %824 = vmatprep.subr.mxu0 0.0
    %825 = vmatpush1.msra.mxu0 0.0
    %826 = vmatprep.subr.mxu0 0.0
    %827 = vmatpush1.msra.mxu0 0.0
    %828 = vmatprep.subr.mxu0 0.0
    %829 = vmatpush1.msra.mxu0 0.0
    %830 = vmatprep.subr.mxu0 0.0
    %831 = vmatpush1.msra.mxu0 0.0
    %832 = vmatprep.subr.mxu0 0.0
    %833 = vmatpush1.msra.mxu0 0.0
    %834 = vmatprep.subr.mxu0 0.0
    %835 = vmatpush1.msra.mxu0 0.0
    %836 = vmatprep.subr.mxu0 0.0
    %837 = vmatpush1.msra.mxu0 0.0
    %838 = vmatprep.subr.mxu0 0.0
    %839 = vmatpush1.msra.mxu0 %v793
    %840 = vmatprep.subr.mxu0 0.0
    %841 = vmatpush2.msra.mxu0 0.0
    %842 = vmatprep.subr.mxu0 0.0
    %843 = vmatpush2.msra.mxu0 0.0
    %844 = vmatprep.subr.mxu0 0.0
    %845 = vmatpush2.msra.mxu0 0.0
    %846 = vmatprep.subr.mxu0 0.0
    %847 = vmatpush2.msra.mxu0 0.0
    %848 = vmatprep.subr.mxu0 0.0
    %849 = vmatpush2.msra.mxu0 0.0
    %850 = vmatprep.subr.mxu0 0.0
    %851 = vmatpush2.msra.mxu0 0.0
    %852 = vmatprep.subr.mxu0 0.0
    %853 = vmatpush2.msra.mxu0 0.0
    %854 = vmatprep.subr.mxu0 0.0
    %855 = vmatpush2.msra.mxu0 0.0
    %856 = vmatprep.subr.mxu0 0.0
    %857 = vmatpush2.msra.mxu0 0.0
    %858 = vmatprep.subr.mxu0 0.0
    %859 = vmatpush2.msra.mxu0 0.0
    %860 = vmatprep.subr.mxu0 0.0
    %861 = vmatpush2.msra.mxu0 0.0
    %862 = vmatprep.subr.mxu0 0.0
    %863 = vmatpush2.msra.mxu0 0.0
    %864 = vmatprep.subr.mxu0 0.0
    %865 = vmatpush2.msra.mxu0 0.0
    %866 = vmatprep.subr.mxu0 0.0
    %867 = vmatpush2.msra.mxu0 0.0
    %868 = vmatprep.subr.mxu0 0.0
    %869 = vmatpush2.msra.mxu0 0.0
    %870 = vmatprep.subr.mxu0 0.0
    %871 = vmatpush2.msra.mxu0 0.0
    %872 = vmatprep.mubr.f32.mxu0 0.0
    %873 = vmatmul.mubr.f32.gmra.mxu0 %v797
    %v874 = vpop.f32.mrf.mxu0
    %v875 = vadd.f32 %v220, %v874
    %v876 = vpop.f32.mrf.mxu0
    %877 = vmatprep.mubr.f32.mxu0 0.0
    %878 = vmatmul.mubr.f32.gmra.mxu0 %v800
    %v879 = vpop.f32.mrf.mxu0
    %v880 = vadd.f32 %v225, %v879
    %v881 = vpop.f32.mrf.mxu0
    %882 = vmatprep.mubr.f32.mxu0 0.0
    %883 = vmatmul.mubr.f32.gmra.mxu0 %v803
    %v884 = vpop.f32.mrf.mxu0
    %v885 = vadd.f32 %v230, %v884
    %v886 = vpop.f32.mrf.mxu0
    %887 = vmatprep.mubr.f32.mxu0 0.0
    %888 = vmatmul.mubr.f32.gmra.mxu0 %v806
    %v889 = vpop.f32.mrf.mxu0
    %v890 = vadd.f32 %v235, %v889
    %v891 = vpop.f32.mrf.mxu0
    %892 = vdwg.mxu0
    %894 = vset.pattern.permute.xlu0 0
    %895 = vperm.xlu0 %894, %v51
    %v896 = vpop.permute.xlu0 %895
    %899 = vset.pattern.permute.xlu0 0
    %900 = vperm.xlu0 %899, %v52
    %v901 = vpop.permute.xlu0 %900
    %904 = vset.pattern.permute.xlu0 0
    %905 = vperm.xlu0 %904, %v53
    %v906 = vpop.permute.xlu0 %905
    %909 = vset.pattern.permute.xlu0 0
    %910 = vperm.xlu0 %909, %v54
    %v911 = vpop.permute.xlu0 %910
    %v913 = vadd.f32 %v875, %v896
    %v914 = vadd.f32 %v880, %v901
    %v915 = vadd.f32 %v885, %v906
    %v916 = vadd.f32 %v890, %v911
    %v917 = vmax.f32 %v913, 0.0
    %v918 = vmax.f32 %v914, 0.0
    %v919 = vmax.f32 %v915, 0.0
    %v920 = vmax.f32 %v916, 0.0
    %922 = vset.pattern.permute.xlu0 0
    %923 = vperm.xlu0 %922, %v55
    %v924 = vpop.permute.xlu0 %923
    %927 = vset.pattern.permute.xlu0 0
    %928 = vperm.xlu0 %927, %v56
    %v929 = vpop.permute.xlu0 %928
    %932 = vset.pattern.permute.xlu0 0
    %933 = vperm.xlu0 %932, %v57
    %v934 = vpop.permute.xlu0 %933
    %937 = vset.pattern.permute.xlu0 0
    %938 = vperm.xlu0 %937, %v58
    %v939 = vpop.permute.xlu0 %938
    %v942 = vsel %vm346, %v32, 0
    %v945 = vsel %vm346, %v33, 0
    %v948 = vsel %vm346, %v34, 0
    %v951 = vsel %vm346, %v35, 0
    %953 = vmatprep.subr.mxu0 0.0
    %954 = vmatpush1.msra.mxu0 0.0
    %955 = vmatprep.subr.mxu0 0.0
    %956 = vmatpush1.msra.mxu0 0.0
    %957 = vmatprep.subr.mxu0 0.0
    %958 = vmatpush1.msra.mxu0 0.0
    %959 = vmatprep.subr.mxu0 0.0
    %960 = vmatpush1.msra.mxu0 0.0
    %961 = vmatprep.subr.mxu0 0.0
    %962 = vmatpush1.msra.mxu0 0.0
    %963 = vmatprep.subr.mxu0 0.0
    %964 = vmatpush1.msra.mxu0 0.0
    %965 = vmatprep.subr.mxu0 0.0
    %966 = vmatpush1.msra.mxu0 0.0
    %967 = vmatprep.subr.mxu0 0.0
    %968 = vmatpush1.msra.mxu0 0.0
    %969 = vmatprep.subr.mxu0 0.0
    %970 = vmatpush1.msra.mxu0 0.0
    %971 = vmatprep.subr.mxu0 0.0
    %972 = vmatpush1.msra.mxu0 0.0
    %973 = vmatprep.subr.mxu0 0.0
    %974 = vmatpush1.msra.mxu0 0.0
    %975 = vmatprep.subr.mxu0 0.0
    %976 = vmatpush1.msra.mxu0 0.0
    %977 = vmatprep.subr.mxu0 0.0
    %978 = vmatpush1.msra.mxu0 %v920
    %979 = vmatprep.subr.mxu0 0.0
    %980 = vmatpush1.msra.mxu0 %v919
    %981 = vmatprep.subr.mxu0 0.0
    %982 = vmatpush1.msra.mxu0 %v918
    %983 = vmatprep.subr.mxu0 0.0
    %984 = vmatpush1.msra.mxu0 %v917
    %985 = vmatprep.subr.mxu0 0.0
    %986 = vmatpush2.msra.mxu0 0.0
    %987 = vmatprep.subr.mxu0 0.0
    %988 = vmatpush2.msra.mxu0 0.0
    %989 = vmatprep.subr.mxu0 0.0
    %990 = vmatpush2.msra.mxu0 0.0
    %991 = vmatprep.subr.mxu0 0.0
    %992 = vmatpush2.msra.mxu0 0.0
    %993 = vmatprep.subr.mxu0 0.0
    %994 = vmatpush2.msra.mxu0 0.0
    %995 = vmatprep.subr.mxu0 0.0
    %996 = vmatpush2.msra.mxu0 0.0
    %997 = vmatprep.subr.mxu0 0.0
    %998 = vmatpush2.msra.mxu0 0.0
    %999 = vmatprep.subr.mxu0 0.0
    %1000 = vmatpush2.msra.mxu0 0.0
    %1001 = vmatprep.subr.mxu0 0.0
    %1002 = vmatpush2.msra.mxu0 0.0
    %1003 = vmatprep.subr.mxu0 0.0
    %1004 = vmatpush2.msra.mxu0 0.0
    %1005 = vmatprep.subr.mxu0 0.0
    %1006 = vmatpush2.msra.mxu0 0.0
    %1007 = vmatprep.subr.mxu0 0.0
    %1008 = vmatpush2.msra.mxu0 0.0
    %1009 = vmatprep.subr.mxu0 0.0
    %1010 = vmatpush2.msra.mxu0 0.0
    %1011 = vmatprep.subr.mxu0 0.0
    %1012 = vmatpush2.msra.mxu0 0.0
    %1013 = vmatprep.subr.mxu0 0.0
    %1014 = vmatpush2.msra.mxu0 0.0
    %1015 = vmatprep.subr.mxu0 0.0
    %1016 = vmatpush2.msra.mxu0 0.0
    %1017 = vmatprep.mubr.f32.mxu0 0.0
    %1018 = vmatmul.mubr.f32.gmra.mxu0 %v942
    %v1019 = vpop.f32.mrf.mxu0
    %v1020 = vadd.f32 %v924, %v1019
    %v1021 = vpop.f32.mrf.mxu0
    %1022 = vmatprep.mubr.f32.mxu0 0.0
    %1023 = vmatmul.mubr.f32.gmra.mxu0 %v945
    %v1024 = vpop.f32.mrf.mxu0
    %v1025 = vadd.f32 %v929, %v1024
    %v1026 = vpop.f32.mrf.mxu0
    %1027 = vmatprep.mubr.f32.mxu0 0.0
    %1028 = vmatmul.mubr.f32.gmra.mxu0 %v948
    %v1029 = vpop.f32.mrf.mxu0
    %v1030 = vadd.f32 %v934, %v1029
    %v1031 = vpop.f32.mrf.mxu0
    %1032 = vmatprep.mubr.f32.mxu0 0.0
    %1033 = vmatmul.mubr.f32.gmra.mxu0 %v951
    %v1034 = vpop.f32.mrf.mxu0
    %v1035 = vadd.f32 %v939, %v1034
    %v1036 = vpop.f32.mrf.mxu0
    %1037 = vdwg.mxu0
    %v1038 = vmax.f32 %v1020, 0.0
    %v1039 = vmax.f32 %v1025, 0.0
    %v1040 = vmax.f32 %v1030, 0.0
    %v1041 = vmax.f32 %v1035, 0.0
    %1043 = vset.pattern.permute.xlu0 0
    %1044 = vperm.xlu0 %1043, %v59
    %v1045 = vpop.permute.xlu0 %1044
    %v1048 = vsel %vm346, %v36, 0
    %1050 = vmatprep.subr.mxu0 0.0
    %1051 = vmatpush1.msra.mxu0 0.0
    %1052 = vmatprep.subr.mxu0 0.0
    %1053 = vmatpush1.msra.mxu0 0.0
    %1054 = vmatprep.subr.mxu0 0.0
    %1055 = vmatpush1.msra.mxu0 0.0
    %1056 = vmatprep.subr.mxu0 0.0
    %1057 = vmatpush1.msra.mxu0 0.0
    %1058 = vmatprep.subr.mxu0 0.0
    %1059 = vmatpush1.msra.mxu0 0.0
    %1060 = vmatprep.subr.mxu0 0.0
    %1061 = vmatpush1.msra.mxu0 0.0
    %1062 = vmatprep.subr.mxu0 0.0
    %1063 = vmatpush1.msra.mxu0 0.0
    %1064 = vmatprep.subr.mxu0 0.0
    %1065 = vmatpush1.msra.mxu0 0.0
    %1066 = vmatprep.subr.mxu0 0.0
    %1067 = vmatpush1.msra.mxu0 0.0
    %1068 = vmatprep.subr.mxu0 0.0
    %1069 = vmatpush1.msra.mxu0 0.0
    %1070 = vmatprep.subr.mxu0 0.0
    %1071 = vmatpush1.msra.mxu0 0.0
    %1072 = vmatprep.subr.mxu0 0.0
    %1073 = vmatpush1.msra.mxu0 0.0
    %1074 = vmatprep.subr.mxu0 0.0
    %1075 = vmatpush1.msra.mxu0 %v1041
    %1076 = vmatprep.subr.mxu0 0.0
    %1077 = vmatpush1.msra.mxu0 %v1040
    %1078 = vmatprep.subr.mxu0 0.0
    %1079 = vmatpush1.msra.mxu0 %v1039
    %1080 = vmatprep.subr.mxu0 0.0
    %1081 = vmatpush1.msra.mxu0 %v1038
    %1082 = vmatprep.subr.mxu0 0.0
    %1083 = vmatpush2.msra.mxu0 0.0
    %1084 = vmatprep.subr.mxu0 0.0
    %1085 = vmatpush2.msra.mxu0 0.0
    %1086 = vmatprep.subr.mxu0 0.0
    %1087 = vmatpush2.msra.mxu0 0.0
    %1088 = vmatprep.subr.mxu0 0.0
    %1089 = vmatpush2.msra.mxu0 0.0
    %1090 = vmatprep.subr.mxu0 0.0
    %1091 = vmatpush2.msra.mxu0 0.0
    %1092 = vmatprep.subr.mxu0 0.0
    %1093 = vmatpush2.msra.mxu0 0.0
    %1094 = vmatprep.subr.mxu0 0.0
    %1095 = vmatpush2.msra.mxu0 0.0
    %1096 = vmatprep.subr.mxu0 0.0
    %1097 = vmatpush2.msra.mxu0 0.0
    %1098 = vmatprep.subr.mxu0 0.0
    %1099 = vmatpush2.msra.mxu0 0.0
    %1100 = vmatprep.subr.mxu0 0.0
    %1101 = vmatpush2.msra.mxu0 0.0
    %1102 = vmatprep.subr.mxu0 0.0
    %1103 = vmatpush2.msra.mxu0 0.0
    %1104 = vmatprep.subr.mxu0 0.0
    %1105 = vmatpush2.msra.mxu0 0.0
    %1106 = vmatprep.subr.mxu0 0.0
    %1107 = vmatpush2.msra.mxu0 0.0
    %1108 = vmatprep.subr.mxu0 0.0
    %1109 = vmatpush2.msra.mxu0 0.0
    %1110 = vmatprep.subr.mxu0 0.0
    %1111 = vmatpush2.msra.mxu0 0.0
    %1112 = vmatprep.subr.mxu0 0.0
    %1113 = vmatpush2.msra.mxu0 0.0
    %1114 = vmatprep.mubr.f32.mxu0 0.0
    %1115 = vmatmul.mubr.f32.gmra.mxu0 %v1048
    %v1116 = vpop.f32.mrf.mxu0
    %v1117 = vadd.f32 %v1045, %v1116
    %v1118 = vpop.f32.mrf.mxu0
    %1119 = vdwg.mxu0
    %v1120 = vtanh.pop %v1117
    %v1122 = vrot.slane %v1120, 7
    %vm1124 = vcmask 1040384
    %v1125 = vsel %vm1124, %v776, %v1122
    %1126 = vst [vmem:[#allocation2] sm:$0xf] %v1125
    // Predicated region
    $region22: #{tpu_custom_call.1} parent=1 // pred_check
      _
    $region23: #{tpu_custom_call.1} parent=1 // pred_check_branch
      %1128 = sbr.rel (0) target = $region25
    $region24: #{tpu_custom_call.1} parent=1 // pred_region
      %s1130 = ssub.s32 64, 64
      %1131 = vsyncadd [#allocation3], %s1130
      %s1133 = sshll.u32 [#allocation2], 4
      %s1134 = int_to_ptr.vmem [resolvable:$true] %s1133
      %1136 = dma.vmem_to_hbm [thread:$0]  %s1134, 64, %s5, [#allocation3]
    $region25: #{tpu_custom_call.1} parent=1 // pred_fallthru
      _
    // Predicated region
    $region26: #{tpu_custom_call.1} parent=1 // pred_check
      _
    $region27: #{tpu_custom_call.1} parent=1 // pred_check_branch
      %1138 = sbr.rel (0) target = $region29
    $region28: #{tpu_custom_call.1} parent=1 // pred_region
      %1139 = dma.done [#allocation3], 64
    $region29: #{tpu_custom_call.1} parent=1 // pred_fallthru
      _
    %1140 = vsyncpa [#allocation3], 1

</llo_original>
